<compile_context>
chip_gen: v6e
topology: v6e:2x2x1
jax: 0.10.0
libtpu: 0.0.40
codegen_flags: <defaults>
</compile_context>

<pallas_src>
import math

import jax
import jax.numpy as jnp
from jax import lax
from jax.experimental import pallas as pl
from jax.experimental.pallas import tpu as pltpu

MAX_VQA_LENGTH = 20

_TN_MAX = 1024                 # cap on the answer-tile width (lanes)
_TB_MAX = 256                  # cap on the batch-tile height (sublanes)
_VMEM_LIMIT = 32 * 1024 * 1024  # explicit scoped-VMEM budget (fits v5e/v6e/v7x)


def _round_up(x, m):
    return ((x + m - 1) // m) * m


def _largest_tile(n_pad, cap=_TN_MAX):
    """Largest multiple of 128 that divides n_pad, capped at `cap`."""
    best = 128
    k = 128
    while k <= min(n_pad, cap):
        if n_pad % k == 0:
            best = k
        k += 128
    return best


def _pick_answer_padding(num_answers):
    """Pad the answer dim so a lane-dense, preferably >=512-wide tile divides it."""
    n_pad = _round_up(num_answers, 128)
    if _largest_tile(n_pad) < 512 and n_pad > 512:
        n_pad = _round_up(num_answers, 512)
    return n_pad


# ---------------------------------------------------------------------------
# Pallas kernels
# ---------------------------------------------------------------------------
def _hidden_kernel(x_ref, w1_ref, b1_ref, g_ref, beta_ref, h_ref):
    """h = LayerNorm(GeLU(x @ w1 + b1)); f32 MXU accumulation, bf16 store."""
    x = x_ref[...]                                           # (TB, HID) bf16
    h = jnp.dot(x, w1_ref[...], preferred_element_type=jnp.float32)
    h = h + b1_ref[...]                                      # (TB, 2*HID) f32

    # GeLU (exact erf form, matching lxmert's GeLU())
    h = h * 0.5 * (1.0 + lax.erf(h * (1.0 / math.sqrt(2.0))))

    # BertLayerNorm over last dim, eps = 1e-12 (biased variance), f32 math
    mu = jnp.mean(h, axis=-1, keepdims=True)
    var = jnp.mean((h - mu) * (h - mu), axis=-1, keepdims=True)
    h = (h - mu) * lax.rsqrt(var + 1e-12)
    h = h * g_ref[...] + beta_ref[...]

    h_ref[...] = h.astype(h_ref.dtype)                       # bf16


def _answer_kernel(h_ref, w2_ref, b2_ref, o_ref):
    """One lane-dense answer tile: o = h @ w2_tile + b2_tile (f32 accum)."""
    out = jnp.dot(h_ref[...], w2_ref[...], preferred_element_type=jnp.float32)
    o_ref[...] = out + b2_ref[...]


# ---------------------------------------------------------------------------
# Fused logit_fc head (wrapper)
# ---------------------------------------------------------------------------
def logit_fc_pallas(x, w1, b1, gamma, beta, w2_p, b2_p, num_answers):
    """x: (B, HID) f32; w1/w2_p bf16 (w2_p/b2_p pre-padded); -> (B, NUM_ANS) f32."""
    B, HID = x.shape
    H2 = w1.shape[1]                       # 2 * HID
    N_pad = w2_p.shape[1]                  # pre-padded answer dim (multiple of 128)

    # ---- tile sizing (lane-dense answer tiles, sublane-packed batch) ------
    TB = min(_TB_MAX, _round_up(B, 8))
    B_pad = _round_up(B, TB)
    TN = _largest_tile(N_pad)
    n_b = B_pad // TB
    n_j = N_pad // TN

    x_p = jnp.pad(x, ((0, B_pad - B), (0, 0))) if B_pad != B else x
    x_bf = x_p.astype(jnp.bfloat16)                      # bf16 into the MXU

    # constant block index across the grid -> single buffer (saves VMEM)
    resident = pl.Buffered(1)

    # --- call 1: h = LayerNorm(GeLU(x @ w1 + b1)) --------------------------
    h = pl.pallas_call(
        _hidden_kernel,
        out_shape=jax.ShapeDtypeStruct((B_pad, H2), jnp.bfloat16),
        grid_spec=pltpu.PrefetchScalarGridSpec(
            num_scalar_prefetch=0,
            grid=(n_b,),
            in_specs=[
                pl.BlockSpec((TB, HID), lambda i: (i, 0)),                        # x tile
                pl.BlockSpec((HID, H2), lambda i: (0, 0), pipeline_mode=resident),  # w1
                pl.BlockSpec((1, H2), lambda i: (0, 0), pipeline_mode=resident),    # b1
                pl.BlockSpec((1, H2), lambda i: (0, 0), pipeline_mode=resident),    # gamma
                pl.BlockSpec((1, H2), lambda i: (0, 0), pipeline_mode=resident),    # beta
            ],
            out_specs=pl.BlockSpec((TB, H2), lambda i: (i, 0)),
        ),
        compiler_params=pltpu.CompilerParams(
            dimension_semantics=("parallel",),
            vmem_limit_bytes=_VMEM_LIMIT),
        cost_estimate=pl.CostEstimate(
            flops=2 * B_pad * HID * H2,
            transcendentals=B_pad * H2,
            bytes_accessed=(x_bf.size * 2 + w1.size * 2
                            + (b1.size + gamma.size + beta.size) * 4
                            + B_pad * H2 * 2)),
    )(x_bf, w1, b1, gamma, beta)

    # --- call 2: logits = h @ w2 + b2, streamed lane-dense w2 tiles --------
    # Both grid axes are independent (no accumulator) -> both "parallel":
    # on v7x the w2 HBM stream is split across the two TensorCores even when
    # B_pad // TB == 1.  Deepen the w2 pipeline when there are enough tiles.
    w2_mode = pl.Buffered(3) if n_j >= 3 else None

    out = pl.pallas_call(
        _answer_kernel,
        out_shape=jax.ShapeDtypeStruct((B_pad, N_pad), jnp.float32),
        grid_spec=pltpu.PrefetchScalarGridSpec(
            num_scalar_prefetch=0,
            grid=(n_b, n_j),
            in_specs=[
                pl.BlockSpec((TB, H2), lambda i, j: (i, 0)),                      # h tile
                pl.BlockSpec((H2, TN), lambda i, j: (0, j), pipeline_mode=w2_mode),  # w2 tile
                pl.BlockSpec((1, TN), lambda i, j: (0, j)),                       # b2 tile
            ],
            out_specs=pl.BlockSpec((TB, TN), lambda i, j: (i, j)),
        ),
        compiler_params=pltpu.CompilerParams(
            dimension_semantics=("parallel", "parallel"),
            vmem_limit_bytes=_VMEM_LIMIT),
        cost_estimate=pl.CostEstimate(
            flops=2 * B_pad * H2 * N_pad,
            transcendentals=0,
            # w2 is re-streamed once per batch tile (n_b times)
            bytes_accessed=(B_pad * H2 * 2
                            + n_b * (H2 * N_pad * 2 + N_pad * 4)
                            + B_pad * N_pad * 4)),
    )(h, w2_p, b2_p)

    return out[:B, :num_answers]


# ---------------------------------------------------------------------------
# Deterministic parameter init (init_bert_weights: Linear ~ N(0, 0.02), bias 0;
# LayerNorm gamma = 1, beta = 0).  Matmul weights are stored in bf16 and w2/b2
# are padded to the lane-dense answer width ONCE here (not per forward call).
# ---------------------------------------------------------------------------
def init_params(key, hid_dim, num_answers, vocab_size, feat_dim):
    ks = jax.random.split(key, 6)
    h2 = 2 * hid_dim
    n_pad = _pick_answer_padding(num_answers)

    w2 = 0.02 * jax.random.normal(ks[1], (h2, num_answers), jnp.float32)
    w2_p = jnp.pad(w2, ((0, 0), (0, n_pad - num_answers))).astype(jnp.bfloat16)

    params = {
        # logit_fc parameters (used inside the Pallas kernels)
        "w1": (0.02 * jax.random.normal(ks[0], (hid_dim, h2),
                                        jnp.float32)).astype(jnp.bfloat16),
        "b1": jnp.zeros((1, h2), jnp.float32),
        "gamma": jnp.ones((1, h2), jnp.float32),
        "beta": jnp.zeros((1, h2), jnp.float32),
        "w2": w2_p,                                    # (2*HID, N_pad) bf16
        "b2": jnp.zeros((1, n_pad), jnp.float32),      # padded bias
        # surrogate encoder parameters (plain-JAX glue)
        "embed": 0.02 * jax.random.normal(ks[2], (vocab_size, hid_dim), jnp.float32),
        "w_vis": 0.02 * jax.random.normal(ks[3], (feat_dim, hid_dim), jnp.float32),
        "w_pos": 0.02 * jax.random.normal(ks[4], (4, hid_dim), jnp.float32),
        "w_pool": 0.02 * jax.random.normal(ks[5], (hid_dim, hid_dim), jnp.float32),
        "b_pool": jnp.zeros((hid_dim,), jnp.float32),
    }
    return params


# ---------------------------------------------------------------------------
# VQAModel.forward
# ---------------------------------------------------------------------------
def vqa_forward(params, feat, pos, sent_ids, num_answers):
    """
    feat: (B, O, F) f32, pos: (B, O, 4) f32, sent_ids: (B, MAX_VQA_LENGTH) i32
    Returns dict with 'logit', 'pooled_output', 'feat_seq', 'input_mask'.
    """
    # --- surrogate LXRTEncoderFeature (mode='lx') -------------------------
    # TODO(synk): replace with a real LXMERT cross-modal encoder; shapes/dtypes match.
    lang_feats = params["embed"][sent_ids]                               # (B, L, H)
    visn_feats = feat @ params["w_vis"] + pos @ params["w_pos"]          # (B, O, H)
    feat_seq = (lang_feats, visn_feats)
    input_mask = jnp.ones(sent_ids.shape, dtype=jnp.int32)               # (B, L)
    pooled = jnp.tanh(
        (lang_feats[:, 0, :] + visn_feats.mean(axis=1)) @ params["w_pool"]
        + params["b_pool"]
    )                                                                    # (B, H)

    # --- logit_fc head: the Pallas hot path -------------------------------
    logit = logit_fc_pallas(
        pooled, params["w1"], params["b1"], params["gamma"], params["beta"],
        params["w2"], params["b2"], num_answers,
    )                                                                    # (B, A)

    return {
        "logit": logit,
        "pooled_output": pooled,
        "feat_seq": feat_seq,
        "input_mask": input_mask,
    }


# ---------------------------------------------------------------------------
# Pure-JAX reference for the fused head (correctness check; same bf16 casts)
# ---------------------------------------------------------------------------
def logit_fc_ref(x, w1, b1, gamma, beta, w2, b2):
    h = jnp.dot(x.astype(jnp.bfloat16), w1,
                preferred_element_type=jnp.float32) + b1
    h = h * 0.5 * (1.0 + lax.erf(h / jnp.sqrt(2.0)))
    mu = jnp.mean(h, axis=-1, keepdims=True)
    var = jnp.mean((h - mu) ** 2, axis=-1, keepdims=True)
    h = (h - mu) / jnp.sqrt(var + 1e-12) * gamma + beta
    h = h.astype(jnp.bfloat16)
    return jnp.dot(h, w2, preferred_element_type=jnp.float32) + b2


if __name__ == "__main__":
    # Small, shape-consistent example: b=2, o=8, f=16, hid=32, answers=16
    B, O, F_DIM, HID, NUM_ANS, VOCAB = 2, 8, 16, 32, 16, 64

    key = jax.random.PRNGKey(0)
    k_feat, k_pos, k_sent, k_param = jax.random.split(key, 4)

    feat = jax.random.normal(k_feat, (B, O, F_DIM), jnp.float32)
    pos = jax.random.uniform(k_pos, (B, O, 4), jnp.float32)
    sent_ids = jax.random.randint(k_sent, (B, MAX_VQA_LENGTH), 0, VOCAB, jnp.int32)

    params = init_params(k_param, HID, NUM_ANS, VOCAB, F_DIM)

    out = vqa_forward(params, feat, pos, sent_ids, NUM_ANS)
    jax.block_until_ready(out["logit"])

    # verify the Pallas head against the pure-JAX reference (same padded bf16 weights)
    ref = logit_fc_ref(out["pooled_output"], params["w1"], params["b1"],
                       params["gamma"], params["beta"], params["w2"],
                       params["b2"])[:, :NUM_ANS]
    assert out["logit"].shape == (B, NUM_ANS)
    assert jnp.allclose(out["logit"], ref, atol=2e-2, rtol=2e-2), (
        jnp.max(jnp.abs(out["logit"] - ref)))

    print("KERNEL_OK")
</pallas_src>

<mosaic_0001>
module attributes {stable_mosaic.version = 11 : i64} {
  func.func @_hidden_kernel(%arg0: i32, %arg1: memref<8x32xbf16, #tpu.memory_space<vmem>>, %arg2: memref<32x64xbf16, #tpu.memory_space<vmem>>, %arg3: memref<1x64xf32, #tpu.memory_space<vmem>>, %arg4: memref<1x64xf32, #tpu.memory_space<vmem>>, %arg5: memref<1x64xf32, #tpu.memory_space<vmem>>, %arg6: memref<8x64xbf16, #tpu.memory_space<vmem>>) attributes {dimension_semantics = [#tpu.dimension_semantics<parallel>], iteration_bounds = array<i64: 1>, scalar_prefetch = 0 : i64, scratch_operands = 0 : i64, tpu.core_type = #tpu.core_type<tc>, window_params = [{transform_indices = @transform_0, window_bounds = array<i64: 8, 32>}, {pipeline_mode = #tpu.pipeline_mode<synchronous>, transform_indices = @transform_1, window_bounds = array<i64: 32, 64>}, {pipeline_mode = #tpu.pipeline_mode<synchronous>, transform_indices = @transform_2, window_bounds = array<i64: 1, 64>}, {pipeline_mode = #tpu.pipeline_mode<synchronous>, transform_indices = @transform_3, window_bounds = array<i64: 1, 64>}, {pipeline_mode = #tpu.pipeline_mode<synchronous>, transform_indices = @transform_4, window_bounds = array<i64: 1, 64>}, {transform_indices = @transform_5, window_bounds = array<i64: 8, 64>}]} {
    %c0 = arith.constant 0 : index
    %c0_0 = arith.constant 0 : index
    %0 = vector.load %arg1[%c0, %c0_0] : memref<8x32xbf16, #tpu.memory_space<vmem>>, vector<8x32xbf16>
    %c0_1 = arith.constant 0 : index
    %c0_2 = arith.constant 0 : index
    %1 = vector.load %arg2[%c0_1, %c0_2] : memref<32x64xbf16, #tpu.memory_space<vmem>>, vector<32x64xbf16>
    %cst = arith.constant dense<0.000000e+00> : vector<8x64xf32>
    %2 = tpu.matmul %0, %1, %cst {dimension_numbers = #tpu.dot_dimension_numbers<[1], [0], [0], [1], [0, 0, 1, 1], [], []>} : vector<8x32xbf16>, vector<32x64xbf16>, vector<8x64xf32> -> vector<8x64xf32>
    %c0_3 = arith.constant 0 : index
    %c0_4 = arith.constant 0 : index
    %3 = vector.load %arg3[%c0_3, %c0_4] : memref<1x64xf32, #tpu.memory_space<vmem>>, vector<1x64xf32>
    %4 = vector.broadcast %3 : vector<1x64xf32> to vector<8x64xf32>
    %5 = arith.addf %2, %4 : vector<8x64xf32>
    %cst_5 = arith.constant 5.000000e-01 : f32
    %6 = vector.broadcast %cst_5 : f32 to vector<8x64xf32>
    %7 = arith.mulf %5, %6 : vector<8x64xf32>
    %cst_6 = arith.constant 0.707106769 : f32
    %8 = vector.broadcast %cst_6 : f32 to vector<8x64xf32>
    %9 = arith.mulf %5, %8 : vector<8x64xf32>
    %10 = math.erf %9 : vector<8x64xf32>
    %cst_7 = arith.constant 1.000000e+00 : f32
    %11 = vector.broadcast %cst_7 : f32 to vector<8x64xf32>
    %12 = arith.addf %11, %10 : vector<8x64xf32>
    %13 = arith.mulf %7, %12 : vector<8x64xf32>
    %cst_8 = arith.constant dense<0.000000e+00> : vector<8xf32>
    %14 = vector.multi_reduction <add>, %13, %cst_8 [1] : vector<8x64xf32> to vector<8xf32>
    %15 = vector.shape_cast %14 : vector<8xf32> to vector<8x1xf32>
    %cst_9 = arith.constant 6.400000e+01 : f32
    %16 = vector.broadcast %cst_9 : f32 to vector<8x1xf32>
    %17 = arith.divf %15, %16 : vector<8x1xf32>
    %18 = vector.broadcast %17 : vector<8x1xf32> to vector<8x64xf32>
    %19 = arith.subf %13, %18 : vector<8x64xf32>
    %20 = vector.broadcast %17 : vector<8x1xf32> to vector<8x64xf32>
    %21 = arith.subf %13, %20 : vector<8x64xf32>
    %22 = arith.mulf %19, %21 : vector<8x64xf32>
    %cst_10 = arith.constant dense<0.000000e+00> : vector<8xf32>
    %23 = vector.multi_reduction <add>, %22, %cst_10 [1] : vector<8x64xf32> to vector<8xf32>
    %24 = vector.shape_cast %23 : vector<8xf32> to vector<8x1xf32>
    %cst_11 = arith.constant 6.400000e+01 : f32
    %25 = vector.broadcast %cst_11 : f32 to vector<8x1xf32>
    %26 = arith.divf %24, %25 : vector<8x1xf32>
    %27 = vector.broadcast %17 : vector<8x1xf32> to vector<8x64xf32>
    %28 = arith.subf %13, %27 : vector<8x64xf32>
    %cst_12 = arith.constant 9.99999996E-13 : f32
    %29 = vector.broadcast %cst_12 : f32 to vector<8x1xf32>
    %30 = arith.addf %26, %29 : vector<8x1xf32>
    %31 = math.rsqrt %30 : vector<8x1xf32>
    %32 = vector.broadcast %31 : vector<8x1xf32> to vector<8x64xf32>
    %33 = arith.mulf %28, %32 : vector<8x64xf32>
    %c0_13 = arith.constant 0 : index
    %c0_14 = arith.constant 0 : index
    %34 = vector.load %arg4[%c0_13, %c0_14] : memref<1x64xf32, #tpu.memory_space<vmem>>, vector<1x64xf32>
    %35 = vector.broadcast %34 : vector<1x64xf32> to vector<8x64xf32>
    %36 = arith.mulf %33, %35 : vector<8x64xf32>
    %c0_15 = arith.constant 0 : index
    %c0_16 = arith.constant 0 : index
    %37 = vector.load %arg5[%c0_15, %c0_16] : memref<1x64xf32, #tpu.memory_space<vmem>>, vector<1x64xf32>
    %38 = vector.broadcast %37 : vector<1x64xf32> to vector<8x64xf32>
    %39 = arith.addf %36, %38 : vector<8x64xf32>
    %40 = arith.truncf %39 : vector<8x64xf32> to vector<8x64xbf16>
    %c0_17 = arith.constant 0 : index
    %c0_18 = arith.constant 0 : index
    %41 = vector.load %arg6[%c0_17, %c0_18] : memref<8x64xbf16, #tpu.memory_space<vmem>>, vector<8x64xbf16>
    tpu.vector_store %arg6[%c0_17, %c0_18], %40 {strides = array<i32>} : memref<8x64xbf16, #tpu.memory_space<vmem>>, vector<8x64xbf16>,
    return
  }
  func.func @transform_0(%arg0: i32) -> (i32, i32) {
    %c0_i32 = arith.constant 0 : i32
    %c0_i32_0 = arith.constant 0 : i32
    return %arg0, %c0_i32 : i32, i32
  }
  func.func @transform_1(%arg0: i32) -> (i32, i32) {
    %c0_i32 = arith.constant 0 : i32
    %c0_i32_0 = arith.constant 0 : i32
    %c0_i32_1 = arith.constant 0 : i32
    return %c0_i32, %c0_i32_0 : i32, i32
  }
  func.func @transform_2(%arg0: i32) -> (i32, i32) {
    %c0_i32 = arith.constant 0 : i32
    %c0_i32_0 = arith.constant 0 : i32
    %c0_i32_1 = arith.constant 0 : i32
    return %c0_i32, %c0_i32_0 : i32, i32
  }
  func.func @transform_3(%arg0: i32) -> (i32, i32) {
    %c0_i32 = arith.constant 0 : i32
    %c0_i32_0 = arith.constant 0 : i32
    %c0_i32_1 = arith.constant 0 : i32
    return %c0_i32, %c0_i32_0 : i32, i32
  }
  func.func @transform_4(%arg0: i32) -> (i32, i32) {
    %c0_i32 = arith.constant 0 : i32
    %c0_i32_0 = arith.constant 0 : i32
    %c0_i32_1 = arith.constant 0 : i32
    return %c0_i32, %c0_i32_0 : i32, i32
  }
  func.func @transform_5(%arg0: i32) -> (i32, i32) {
    %c0_i32 = arith.constant 0 : i32
    %c0_i32_0 = arith.constant 0 : i32
    return %arg0, %c0_i32 : i32, i32
  }
}

</mosaic_0001>

<llo_original>
// kernel: tpu_custom_call.1
$region0: #{tpu_custom_call.1}
  #allocation0 [shape = 'u32[]', space=smem, size = 0x4, offset = 0x4, fixed_abs, tag = 'smem constant byte address 0x4 - core index']
  #allocation1 [shape = 'u32[144,128]{1,0:T(1,128)}', space=vmem, size = 0x12000, scoped, tag = 'internal scratch']
  %s0 = inlined_call_operand.hbm [shape: bf16[8,32], index: 0, kind: input, shape index: {}]
  %s1 = inlined_call_operand.hbm [shape: bf16[32,64], index: 1, kind: input, shape index: {}]
  %s2 = inlined_call_operand.vmem [shape: f32[1,64], index: 2, kind: input, shape index: {}]
  %s3 = inlined_call_operand.vmem [shape: f32[1,64], index: 3, kind: input, shape index: {}]
  %s4 = inlined_call_operand.vmem [shape: f32[1,64], index: 4, kind: input, shape index: {}]
  %s5 = inlined_call_operand.hbm [shape: bf16[8,64], index: 5, kind: output, shape index: {}]
  %s6 = sld [smem:[#allocation0]]
  $region38: #{tpu_custom_call.1} parent=0
    _
  %s8 = ssub.s32 1, %s6
  %s9 = scalar_select 0, %s8, %s6
  $region1: #{tpu_custom_call.1} parent=0
    #allocation2 [shape = 'u8[2048]{0}', space=vmem, size = 0x800, scoped, tag = 'input window, operand 0, single buffered']
    #allocation3 [shape = 's32[1]{0}', space=sflag, size = 0x4, scoped, tag = 'scoped memory for tpu_custom_call.1']
    #allocation4 [shape = 's32[1]{0}', space=sflag, size = 0x4, scoped, tag = 'scoped memory for tpu_custom_call.1']
    #allocation5 [shape = 'u8[8192]{0}', space=vmem, size = 0x2000, scoped, tag = 'input window, operand 1, single buffered']
    #allocation6 [shape = 's32[1]{0}', space=sflag, size = 0x4, scoped, tag = 'scoped memory for tpu_custom_call.1']
    #allocation7 [shape = 'u8[2048]{0}', space=vmem, size = 0x800, scoped, tag = 'output window, operand 0, single buffered']
    %10 = vsyncpa [#allocation3], 0
    %11 = vsyncpa [#allocation6], 0
    %12 = vsyncpa [#allocation4], 0
    // Predicated region
    $region2: #{tpu_custom_call.1} parent=1 // pred_check
      _
    $region3: #{tpu_custom_call.1} parent=1 // pred_check_branch
      %14 = sbr.rel (0) target = $region5
    $region4: #{tpu_custom_call.1} parent=1 // pred_region
      %s16 = ssub.s32 64, 64
      %17 = vsyncadd [#allocation3], %s16
      %s19 = sshll.u32 [#allocation2], 4
      %s20 = int_to_ptr.vmem [resolvable:$true] %s19
      %22 = dma.hbm_to_vmem [thread:$0]  %s0, 64, %s20, [#allocation3]
    $region5: #{tpu_custom_call.1} parent=1 // pred_fallthru
      _
    // Predicated region
    $region6: #{tpu_custom_call.1} parent=1 // pred_check
      _
    $region7: #{tpu_custom_call.1} parent=1 // pred_check_branch
      %24 = sbr.rel (0) target = $region9
    $region8: #{tpu_custom_call.1} parent=1 // pred_region
      %s26 = ssub.s32 256, 256
      %27 = vsyncadd [#allocation6], %s26
      %s28 = sshll.u32 [#allocation5], 4
      %s29 = int_to_ptr.vmem [resolvable:$true] %s28
      %34 = dma.hbm_to_vmem [thread:$0]  %s1, 256, %s29, [#allocation6], 64, 64, 4
    $region9: #{tpu_custom_call.1} parent=1 // pred_fallthru
      _
    // Predicated region
    $region10: #{tpu_custom_call.1} parent=1 // pred_check
      _
    $region11: #{tpu_custom_call.1} parent=1 // pred_check_branch
      %36 = sbr.rel (0) target = $region13
    $region12: #{tpu_custom_call.1} parent=1 // pred_region
      _
    $region13: #{tpu_custom_call.1} parent=1 // pred_fallthru
      _
    // Predicated region
    $region14: #{tpu_custom_call.1} parent=1 // pred_check
      _
    $region15: #{tpu_custom_call.1} parent=1 // pred_check_branch
      %38 = sbr.rel (0) target = $region17
    $region16: #{tpu_custom_call.1} parent=1 // pred_region
      _
    $region17: #{tpu_custom_call.1} parent=1 // pred_fallthru
      _
    // Predicated region
    $region18: #{tpu_custom_call.1} parent=1 // pred_check
      _
    $region19: #{tpu_custom_call.1} parent=1 // pred_check_branch
      %40 = sbr.rel (0) target = $region21
    $region20: #{tpu_custom_call.1} parent=1 // pred_region
      _
    $region21: #{tpu_custom_call.1} parent=1 // pred_fallthru
      _
    // Predicated region
    $region22: #{tpu_custom_call.1} parent=1 // pred_check
      _
    $region23: #{tpu_custom_call.1} parent=1 // pred_check_branch
      %42 = sbr.rel (0) target = $region25
    $region24: #{tpu_custom_call.1} parent=1 // pred_region
      %43 = dma.done [#allocation3], 64
    $region25: #{tpu_custom_call.1} parent=1 // pred_fallthru
      _
    // Predicated region
    $region26: #{tpu_custom_call.1} parent=1 // pred_check
      _
    $region27: #{tpu_custom_call.1} parent=1 // pred_check_branch
      %45 = sbr.rel (0) target = $region29
    $region28: #{tpu_custom_call.1} parent=1 // pred_region
      %46 = dma.done [#allocation6], 256
    $region29: #{tpu_custom_call.1} parent=1 // pred_fallthru
      _
    %v48 = vld [vmem:[#allocation2] sm:$0xf]
    %v49 = vld [vmem:[#allocation5] sm:$0xf]
    %v50 = vld [vmem:[#allocation5 + $0x4] sm:$0xf]
    %v51 = vld [vmem:[#allocation5 + $0x8] sm:$0xf]
    %v52 = vld [vmem:[#allocation5 + $0xc] sm:$0xf]
    %v53 = vld [vmem:[%s2] sm:$0x1]
    %v55 = vlaneseq
    %v56 = vshrl.u32 %v55, 7
    %v57 = vsub.s32 0, %v56
    %v58 = vrot.slane %v53, %v57
    %v64 = vunpack.c.l.b16 %v49
    %v65 = vunpack.c.l.b16 %v50
    %v66 = vunpack.c.l.b16 %v51
    %v67 = vunpack.c.l.b16 %v52
    %v68 = vpack.c.b16 %v65, %v64
    %v69 = vpack.c.b16 %v67, %v66
    %vm72 = vcmask 261120
    %v74 = vsel %vm72, %v48, 0
    %76 = vmatprep.subr.bf16.mxu0 0
    %77 = vmatpush1.bf16.msra.mxu0 0
    %78 = vmatprep.subr.bf16.mxu0 0
    %79 = vmatpush1.bf16.msra.mxu0 0
    %80 = vmatprep.subr.bf16.mxu0 0
    %81 = vmatpush1.bf16.msra.mxu0 0
    %82 = vmatprep.subr.bf16.mxu0 0
    %83 = vmatpush1.bf16.msra.mxu0 0
    %84 = vmatprep.subr.bf16.mxu0 0
    %85 = vmatpush1.bf16.msra.mxu0 0
    %86 = vmatprep.subr.bf16.mxu0 0
    %87 = vmatpush1.bf16.msra.mxu0 0
    %88 = vmatprep.subr.bf16.mxu0 0
    %89 = vmatpush1.bf16.msra.mxu0 %v69
    %90 = vmatprep.subr.bf16.mxu0 0
    %91 = vmatpush1.bf16.msra.mxu0 %v68
    %92 = vmatprep.subr.bf16.mxu0 0
    %93 = vmatpush2.bf16.msra.mxu0 0
    %94 = vmatprep.subr.bf16.mxu0 0
    %95 = vmatpush2.bf16.msra.mxu0 0
    %96 = vmatprep.subr.bf16.mxu0 0
    %97 = vmatpush2.bf16.msra.mxu0 0
    %98 = vmatprep.subr.bf16.mxu0 0
    %99 = vmatpush2.bf16.msra.mxu0 0
    %100 = vmatprep.subr.bf16.mxu0 0
    %101 = vmatpush2.bf16.msra.mxu0 0
    %102 = vmatprep.subr.bf16.mxu0 0
    %103 = vmatpush2.bf16.msra.mxu0 0
    %104 = vmatprep.subr.bf16.mxu0 0
    %105 = vmatpush2.bf16.msra.mxu0 0
    %106 = vmatprep.subr.bf16.mxu0 0
    %107 = vmatpush2.bf16.msra.mxu0 0
    %108 = vmatprep.mubr.bf16.mxu0 0
    %109 = vmatmul.mubr.bf16.gmra.mxu0 %v74
    %v110 = vpop.f32.mrf.mxu0
    %v111 = vadd.f32 %v58, %v110
    %v112 = vpop.f32.mrf.mxu0
    %v113 = vpop.f32.mrf.mxu0
    %v114 = vpop.f32.mrf.mxu0
    %115 = vdwg.mxu0
    %v116 = vmul.f32 %v111, 0.5
    %v117 = vmul.f32 %v111, 0.70710677
    %v118 = verf.f32.pop %v117
    %v119 = vadd.f32 %v118, 1.0
    %v120 = vmul.f32 %v116, %v119
    %vm121 = vcmask 523264
    %v122 = vsel %vm121, %v120, 0.0
    %123 = vadd.xlane.f32.xlu0 %v122
    %v124 = vpop.xlane.xlu0 %123
    %v125 = vrcp.pop 64.0
    %v126 = vmul.f32 %v124, %v125
    %v127 = vsub.f32 %v120, %v126
    %v128 = vmul.f32 %v127, %v127
    %v129 = vsel %vm121, %v128, 0.0
    %130 = vadd.xlane.f32.xlu0 %v129
    %v131 = vpop.xlane.xlu0 %130
    %v132 = vmul.f32 %v131, %v125
    %v133 = vadd.f32 %v132, 1e-12
    %v134 = vrsqrt.pop %v133
    %v135 = vmul.f32 %v127, %v134
    %v136 = vld [vmem:[%s3] sm:$0x1]
    %v138 = vlaneseq
    %v139 = vshrl.u32 %v138, 7
    %v140 = vsub.s32 0, %v139
    %v141 = vrot.slane %v136, %v140
    %v143 = vmul.f32 %v135, %v141
    %v144 = vld [vmem:[%s4] sm:$0x1]
    %v146 = vlaneseq
    %v147 = vshrl.u32 %v146, 7
    %v148 = vsub.s32 0, %v147
    %v149 = vrot.slane %v144, %v148
    %v151 = vadd.f32 %v143, %v149
    %v152 = vpack.c.bf16 %v151, %v151
    %vm153 = vcmask 519168
    %154 = vst.msk [vmem:[#allocation7] sm:$0xf] %vm153, %v152
    // Predicated region
    $region30: #{tpu_custom_call.1} parent=1 // pred_check
      _
    $region31: #{tpu_custom_call.1} parent=1 // pred_check_branch
      %156 = sbr.rel (0) target = $region33
    $region32: #{tpu_custom_call.1} parent=1 // pred_region
      %s158 = ssub.s32 64, 64
      %159 = vsyncadd [#allocation4], %s158
      %s161 = sshll.u32 [#allocation7], 4
      %s162 = int_to_ptr.vmem [resolvable:$true] %s161
      %164 = dma.vmem_to_hbm [thread:$0]  %s162, 64, %s5, [#allocation4]
    $region33: #{tpu_custom_call.1} parent=1 // pred_fallthru
      _
    // Predicated region
    $region34: #{tpu_custom_call.1} parent=1 // pred_check
      _
    $region35: #{tpu_custom_call.1} parent=1 // pred_check_branch
      %166 = sbr.rel (0) target = $region37
    $region36: #{tpu_custom_call.1} parent=1 // pred_region
      %167 = dma.done [#allocation4], 64
    $region37: #{tpu_custom_call.1} parent=1 // pred_fallthru
      _
    %168 = vsyncpa [#allocation3], 1
    %169 = vsyncpa [#allocation6], 1
    %170 = vsyncpa [#allocation4], 1

</llo_original>
